<compile_context>
chip_gen: v7x
topology: tpu7x:2x2x1
jax: 0.10.0
libtpu: 0.0.40
codegen_flags: <defaults>
</compile_context>

<pallas_src>
import numpy as np
import jax
import jax.numpy as jnp
from jax.experimental import pallas as pl
from jax.experimental.pallas import tpu as pltpu

KH, KW = 4, 3
SH, SW = 2, 1
PH, PW = 1, 1


def upsample_kernel(x_ref, w_ref, b_ref, o_ref, colw_ref):
    """One batch element per grid step.

    x_ref:    (1, H+2, W+2, C)   zero-padded NHWC input
    w_ref:    (4, C, 3*C)        per-(phase, row-tap) weights, kh order (3,1,2,0),
                                 columns ordered (dw, ci)
    b_ref:    (C, 1)             bias
    o_ref:    (1, 2, C, H*W)     phase-major / channel-major output (lane-dense minor)
    colw_ref: VMEM ((H+2)*W, 3*C) width-only im2col buffer, shared by both phases
    """
    Hp, Wp, C = x_ref.shape[1], x_ref.shape[2], x_ref.shape[3]
    H, W = Hp - 2, Wp - 2
    HW = H * W

    # Width-only im2col: 3 shifted copies (one per dw tap) over ALL padded rows.
    # Row offsets (dh) are handled later as free sublane-slice views of this buffer.
    for dw in range(KW):
        colw_ref[:, dw * C:(dw + 1) * C] = (
            x_ref[0, :, dw:dw + W, :].reshape(Hp * W, C))

    bias = b_ref[...]                              # (C, 1) -> lane broadcast
    dn = (((1,), (1,)), ((), ()))                  # contract the (dw, ci) axis of both
    for p in range(2):                             # p=0: even output rows, p=1: odd
        # padded-row offsets d = p and d = p+1; W is a multiple of 8 so these are
        # aligned sublane slices (no relayout copy).
        patch_a = colw_ref[p * W:p * W + HW, :]                # (HW, 3C)
        patch_b = colw_ref[(p + 1) * W:(p + 1) * W + HW, :]    # (HW, 3C)
        res = jax.lax.dot_general(w_ref[2 * p], patch_a, dn,
                                  preferred_element_type=jnp.float32)
        res += jax.lax.dot_general(w_ref[2 * p + 1], patch_b, dn,
                                   preferred_element_type=jnp.float32)
        o_ref[0, p, :, :] = (res + bias).astype(o_ref.dtype)   # (C, HW), unmasked stores


def _tap_weight(w, kh):
    """w: (C_in, C_out, KH, KW) -> (C_out, KW*C_in), columns ordered (dw, ci).

    dw is the padded-input column offset, which corresponds to kw = KW-1-dw.
    """
    c_in, c_out = w.shape[0], w.shape[1]
    ws = w[:, :, kh, ::-1]                  # (Cin, Cout, KW), last axis indexed by dw
    ws = jnp.transpose(ws, (1, 2, 0))       # (Cout, KW(dw), Cin)
    return ws.reshape(c_out, KW * c_in)


def upsample_forward(x_nchw, w, b):
    """ConvTranspose2d(dim, dim, (4,3), (2,1), (1,1)) forward.

    x_nchw: (B, C, H, W) float32
    w:      (C_in, C_out, KH, KW)  -- PyTorch ConvTranspose2d weight layout
    b:      (C_out,)
    returns (B, C, 2H, W) float32
    """
    B, C, H, W = x_nchw.shape

    # NCHW -> NHWC plus a 1-pixel zero halo.
    x = jnp.transpose(x_nchw, (0, 2, 3, 1))                      # (B, H, W, C)
    x_pad = jnp.pad(x, ((0, 0), (1, 1), (1, 1), (0, 0)))         # (B, H+2, W+2, C)

    # Per-(phase, row-tap) fused width weights:
    #   even rows use kh (3, 1); odd rows use kh (2, 0).
    w_taps = jnp.stack([_tap_weight(w, kh) for kh in (3, 1, 2, 0)],
                       axis=0)                                   # (4, C, 3C)
    b2 = b.reshape(C, 1)

    # TODO(synk): for very large H/W/C add a row-tiled grid axis with a 2-row
    # halo (manual DMA overlap) so each block fits v7x's 64 MiB VMEM even at
    # batch=1; the batch grid axis is enough for this module's shapes.
    o = pl.pallas_call(
        upsample_kernel,
        out_shape=jax.ShapeDtypeStruct((B, 2, C, H * W), jnp.float32),
        grid=(B,),
        in_specs=[
            pl.BlockSpec((1, H + 2, W + 2, C), lambda bi: (bi, 0, 0, 0)),
            pl.BlockSpec((4, C, KW * C), lambda bi: (0, 0, 0)),
            pl.BlockSpec((C, 1), lambda bi: (0, 0)),
        ],
        out_specs=pl.BlockSpec((1, 2, C, H * W), lambda bi: (bi, 0, 0, 0)),
        scratch_shapes=[pltpu.VMEM(((H + 2) * W, KW * C), jnp.float32)],
        compiler_params=pltpu.CompilerParams(
            dimension_semantics=("parallel",),
            vmem_limit_bytes=32 * 1024 * 1024),
    )(x_pad, w_taps, b2)

    # (B, 2(phase), C, H*W) -> NCHW (B, C, 2H, W): interleave even/odd rows.
    o = o.reshape(B, 2, C, H, W)
    y = jnp.transpose(o, (0, 2, 3, 1, 4))                        # (B, C, H, 2, W)
    return y.reshape(B, C, 2 * H, W)


def upsample_reference(x_nchw, w, b):
    """Pure-JAX reference for ConvTranspose2d via lhs-dilated correlation."""
    C = x_nchw.shape[1]
    rhs = jnp.transpose(w[:, :, ::-1, ::-1], (1, 0, 2, 3))        # (C_out, C_in, KH, KW)
    y = jax.lax.conv_general_dilated(
        x_nchw, rhs,
        window_strides=(1, 1),
        padding=((KH - 1 - PH, KH - 1 - PH), (KW - 1 - PW, KW - 1 - PW)),
        lhs_dilation=(SH, SW),
        dimension_numbers=("NCHW", "OIHW", "NCHW"),
    )
    return y + b.reshape(1, C, 1, 1)


if __name__ == "__main__":
    key = jax.random.PRNGKey(0)
    kx, kw, kb = jax.random.split(key, 3)

    B, dim, H, W = 2, 8, 16, 16
    x = jax.random.normal(kx, (B, dim, H, W), dtype=jnp.float32)

    # Same init ranges as nn.ConvTranspose2d(dim, dim, (4,3), (2,1), (1,1))
    fan = dim * KH * KW
    bound = 1.0 / np.sqrt(fan)
    w = jax.random.uniform(kw, (dim, dim, KH, KW), jnp.float32, -bound, bound)
    b = jax.random.uniform(kb, (dim,), jnp.float32, -bound, bound)

    y = upsample_forward(x, w, b)
    y = jax.block_until_ready(y)

    assert y.shape == (B, dim, 2 * H, W), y.shape

    y_ref = jax.block_until_ready(upsample_reference(x, w, b))
    assert np.allclose(np.asarray(y), np.asarray(y_ref), atol=1e-4, rtol=1e-4), (
        "mismatch vs reference")

    print("KERNEL_OK")
</pallas_src>

<mosaic_0001>
module attributes {stable_mosaic.version = 11 : i64} {
  func.func @upsample_kernel(%arg0: i32, %arg1: memref<1x18x18x8xf32, #tpu.memory_space<vmem>>, %arg2: memref<4x8x24xf32, #tpu.memory_space<vmem>>, %arg3: memref<8x1xf32, #tpu.memory_space<vmem>>, %arg4: memref<1x2x8x256xf32, #tpu.memory_space<vmem>>, %arg5: memref<288x24xf32, #tpu.memory_space<vmem>>) attributes {dimension_semantics = [#tpu.dimension_semantics<parallel>], iteration_bounds = array<i64: 2>, scalar_prefetch = 0 : i64, scratch_operands = 1 : i64, tpu.core_type = #tpu.core_type<tc>, window_params = [{transform_indices = @transform_0, window_bounds = array<i64: 1, 18, 18, 8>}, {pipeline_mode = #tpu.pipeline_mode<synchronous>, transform_indices = @transform_1, window_bounds = array<i64: 4, 8, 24>}, {pipeline_mode = #tpu.pipeline_mode<synchronous>, transform_indices = @transform_2, window_bounds = array<i64: 8, 1>}, {transform_indices = @transform_3, window_bounds = array<i64: 1, 2, 8, 256>}]} {
    %c0 = arith.constant 0 : index
    %c0_0 = arith.constant 0 : index
    %c0_1 = arith.constant 0 : index
    %c0_2 = arith.constant 0 : index
    %0 = vector.load %arg1[%c0, %c0_0, %c0_1, %c0_2] : memref<1x18x18x8xf32, #tpu.memory_space<vmem>>, vector<1x18x16x8xf32>
    %1 = vector.shape_cast %0 : vector<1x18x16x8xf32> to vector<18x16x8xf32>
    %2 = vector.shape_cast %1 : vector<18x16x8xf32> to vector<288x8xf32>
    %c0_3 = arith.constant 0 : index
    %c0_4 = arith.constant 0 : index
    %3 = vector.load %arg5[%c0_3, %c0_4] : memref<288x24xf32, #tpu.memory_space<vmem>>, vector<288x8xf32>
    tpu.vector_store %arg5[%c0_3, %c0_4], %2 {strides = array<i32>} : memref<288x24xf32, #tpu.memory_space<vmem>>, vector<288x8xf32>,
    %c0_5 = arith.constant 0 : index
    %c0_6 = arith.constant 0 : index
    %c1 = arith.constant 1 : index
    %c0_7 = arith.constant 0 : index
    %4 = vector.load %arg1[%c0_5, %c0_6, %c1, %c0_7] : memref<1x18x18x8xf32, #tpu.memory_space<vmem>>, vector<1x18x16x8xf32>
    %5 = vector.shape_cast %4 : vector<1x18x16x8xf32> to vector<18x16x8xf32>
    %6 = vector.shape_cast %5 : vector<18x16x8xf32> to vector<288x8xf32>
    %c0_8 = arith.constant 0 : index
    %c8 = arith.constant 8 : index
    %7 = vector.load %arg5[%c0_8, %c8] : memref<288x24xf32, #tpu.memory_space<vmem>>, vector<288x8xf32>
    tpu.vector_store %arg5[%c0_8, %c8], %6 {strides = array<i32>} : memref<288x24xf32, #tpu.memory_space<vmem>>, vector<288x8xf32>,
    %c0_9 = arith.constant 0 : index
    %c0_10 = arith.constant 0 : index
    %c2 = arith.constant 2 : index
    %c0_11 = arith.constant 0 : index
    %8 = vector.load %arg1[%c0_9, %c0_10, %c2, %c0_11] : memref<1x18x18x8xf32, #tpu.memory_space<vmem>>, vector<1x18x16x8xf32>
    %9 = vector.shape_cast %8 : vector<1x18x16x8xf32> to vector<18x16x8xf32>
    %10 = vector.shape_cast %9 : vector<18x16x8xf32> to vector<288x8xf32>
    %c0_12 = arith.constant 0 : index
    %c16 = arith.constant 16 : index
    %11 = vector.load %arg5[%c0_12, %c16] : memref<288x24xf32, #tpu.memory_space<vmem>>, vector<288x8xf32>
    tpu.vector_store %arg5[%c0_12, %c16], %10 {strides = array<i32>} : memref<288x24xf32, #tpu.memory_space<vmem>>, vector<288x8xf32>,
    %c0_13 = arith.constant 0 : index
    %c0_14 = arith.constant 0 : index
    %12 = vector.load %arg3[%c0_13, %c0_14] : memref<8x1xf32, #tpu.memory_space<vmem>>, vector<8x1xf32>
    %c0_15 = arith.constant 0 : index
    %c0_16 = arith.constant 0 : index
    %13 = vector.load %arg5[%c0_15, %c0_16] : memref<288x24xf32, #tpu.memory_space<vmem>>, vector<256x24xf32>
    %c16_17 = arith.constant 16 : index
    %c0_18 = arith.constant 0 : index
    %14 = vector.load %arg5[%c16_17, %c0_18] : memref<288x24xf32, #tpu.memory_space<vmem>>, vector<256x24xf32>
    %c0_19 = arith.constant 0 : index
    %c0_20 = arith.constant 0 : index
    %c0_21 = arith.constant 0 : index
    %15 = vector.load %arg2[%c0_19, %c0_20, %c0_21] : memref<4x8x24xf32, #tpu.memory_space<vmem>>, vector<1x8x24xf32>
    %16 = vector.shape_cast %15 : vector<1x8x24xf32> to vector<8x24xf32>
    %cst = arith.constant dense<0.000000e+00> : vector<8x256xf32>
    %17 = tpu.matmul %16, %13, %cst {dimension_numbers = #tpu.dot_dimension_numbers<[1], [1], [0], [0], [0, 0, 1, 0], [], []>} : vector<8x24xf32>, vector<256x24xf32>, vector<8x256xf32> -> vector<8x256xf32>
    %c1_22 = arith.constant 1 : index
    %c0_23 = arith.constant 0 : index
    %c0_24 = arith.constant 0 : index
    %18 = vector.load %arg2[%c1_22, %c0_23, %c0_24] : memref<4x8x24xf32, #tpu.memory_space<vmem>>, vector<1x8x24xf32>
    %19 = vector.shape_cast %18 : vector<1x8x24xf32> to vector<8x24xf32>
    %cst_25 = arith.constant dense<0.000000e+00> : vector<8x256xf32>
    %20 = tpu.matmul %19, %14, %cst_25 {dimension_numbers = #tpu.dot_dimension_numbers<[1], [1], [0], [0], [0, 0, 1, 0], [], []>} : vector<8x24xf32>, vector<256x24xf32>, vector<8x256xf32> -> vector<8x256xf32>
    %21 = arith.addf %17, %20 : vector<8x256xf32>
    %22 = vector.broadcast %12 : vector<8x1xf32> to vector<8x256xf32>
    %23 = arith.addf %21, %22 : vector<8x256xf32>
    %c0_26 = arith.constant 0 : index
    %c0_27 = arith.constant 0 : index
    %c0_28 = arith.constant 0 : index
    %c0_29 = arith.constant 0 : index
    %24 = vector.load %arg4[%c0_26, %c0_27, %c0_28, %c0_29] : memref<1x2x8x256xf32, #tpu.memory_space<vmem>>, vector<1x1x8x256xf32>
    %25 = vector.shape_cast %24 : vector<1x1x8x256xf32> to vector<8x256xf32>
    %26 = vector.shape_cast %23 : vector<8x256xf32> to vector<1x1x8x256xf32>
    tpu.vector_store %arg4[%c0_26, %c0_27, %c0_28, %c0_29], %26 {strides = array<i32>} : memref<1x2x8x256xf32, #tpu.memory_space<vmem>>, vector<1x1x8x256xf32>,
    %c16_30 = arith.constant 16 : index
    %c0_31 = arith.constant 0 : index
    %27 = vector.load %arg5[%c16_30, %c0_31] : memref<288x24xf32, #tpu.memory_space<vmem>>, vector<256x24xf32>
    %c32 = arith.constant 32 : index
    %c0_32 = arith.constant 0 : index
    %28 = vector.load %arg5[%c32, %c0_32] : memref<288x24xf32, #tpu.memory_space<vmem>>, vector<256x24xf32>
    %c2_33 = arith.constant 2 : index
    %c0_34 = arith.constant 0 : index
    %c0_35 = arith.constant 0 : index
    %29 = vector.load %arg2[%c2_33, %c0_34, %c0_35] : memref<4x8x24xf32, #tpu.memory_space<vmem>>, vector<1x8x24xf32>
    %30 = vector.shape_cast %29 : vector<1x8x24xf32> to vector<8x24xf32>
    %cst_36 = arith.constant dense<0.000000e+00> : vector<8x256xf32>
    %31 = tpu.matmul %30, %27, %cst_36 {dimension_numbers = #tpu.dot_dimension_numbers<[1], [1], [0], [0], [0, 0, 1, 0], [], []>} : vector<8x24xf32>, vector<256x24xf32>, vector<8x256xf32> -> vector<8x256xf32>
    %c3 = arith.constant 3 : index
    %c0_37 = arith.constant 0 : index
    %c0_38 = arith.constant 0 : index
    %32 = vector.load %arg2[%c3, %c0_37, %c0_38] : memref<4x8x24xf32, #tpu.memory_space<vmem>>, vector<1x8x24xf32>
    %33 = vector.shape_cast %32 : vector<1x8x24xf32> to vector<8x24xf32>
    %cst_39 = arith.constant dense<0.000000e+00> : vector<8x256xf32>
    %34 = tpu.matmul %33, %28, %cst_39 {dimension_numbers = #tpu.dot_dimension_numbers<[1], [1], [0], [0], [0, 0, 1, 0], [], []>} : vector<8x24xf32>, vector<256x24xf32>, vector<8x256xf32> -> vector<8x256xf32>
    %35 = arith.addf %31, %34 : vector<8x256xf32>
    %36 = vector.broadcast %12 : vector<8x1xf32> to vector<8x256xf32>
    %37 = arith.addf %35, %36 : vector<8x256xf32>
    %c0_40 = arith.constant 0 : index
    %c1_41 = arith.constant 1 : index
    %c0_42 = arith.constant 0 : index
    %c0_43 = arith.constant 0 : index
    %38 = vector.load %arg4[%c0_40, %c1_41, %c0_42, %c0_43] : memref<1x2x8x256xf32, #tpu.memory_space<vmem>>, vector<1x1x8x256xf32>
    %39 = vector.shape_cast %38 : vector<1x1x8x256xf32> to vector<8x256xf32>
    %40 = vector.shape_cast %37 : vector<8x256xf32> to vector<1x1x8x256xf32>
    tpu.vector_store %arg4[%c0_40, %c1_41, %c0_42, %c0_43], %40 {strides = array<i32>} : memref<1x2x8x256xf32, #tpu.memory_space<vmem>>, vector<1x1x8x256xf32>,
    return
  }
  func.func @transform_0(%arg0: i32) -> (i32, i32, i32, i32) {
    %c0_i32 = arith.constant 0 : i32
    %c0_i32_0 = arith.constant 0 : i32
    %c0_i32_1 = arith.constant 0 : i32
    %c0_i32_2 = arith.constant 0 : i32
    return %arg0, %c0_i32, %c0_i32_0, %c0_i32_1 : i32, i32, i32, i32
  }
  func.func @transform_1(%arg0: i32) -> (i32, i32, i32) {
    %c0_i32 = arith.constant 0 : i32
    %c0_i32_0 = arith.constant 0 : i32
    %c0_i32_1 = arith.constant 0 : i32
    %c0_i32_2 = arith.constant 0 : i32
    return %c0_i32, %c0_i32_0, %c0_i32_1 : i32, i32, i32
  }
  func.func @transform_2(%arg0: i32) -> (i32, i32) {
    %c0_i32 = arith.constant 0 : i32
    %c0_i32_0 = arith.constant 0 : i32
    %c0_i32_1 = arith.constant 0 : i32
    return %c0_i32, %c0_i32_0 : i32, i32
  }
  func.func @transform_3(%arg0: i32) -> (i32, i32, i32, i32) {
    %c0_i32 = arith.constant 0 : i32
    %c0_i32_0 = arith.constant 0 : i32
    %c0_i32_1 = arith.constant 0 : i32
    %c0_i32_2 = arith.constant 0 : i32
    return %arg0, %c0_i32, %c0_i32_0, %c0_i32_1 : i32, i32, i32, i32
  }
}

</mosaic_0001>

<llo_original>
// kernel: tpu_custom_call.1
$region0: #{tpu_custom_call.1}
  #allocation0 [shape = 'u32[]', space=smem, size = 0x4, offset = 0x4, fixed_abs, tag = 'smem constant byte address 0x4 - core index']
  #allocation1 [shape = 'u32[144,128]{1,0:T(1,128)}', space=vmem, size = 0x12000, scoped, tag = 'internal scratch']
  #allocation2 [shape = 'f32[288,24]{1,0:T(8,128)}', space=vmem, size = 0x24000, scoped, tag = 'scratch operand']
  %s0 = inlined_call_operand.vmem [shape: f32[2,18,18,8], index: 0, kind: input, shape index: {}]
  %s1 = inlined_call_operand.vmem [shape: f32[4,8,24], index: 1, kind: input, shape index: {}]
  %s2 = inlined_call_operand.vmem [shape: f32[8,1], index: 2, kind: input, shape index: {}]
  %s3 = inlined_call_operand.hbm [shape: f32[2,2,8,256], index: 3, kind: output, shape index: {}]
  %s4 = sld [smem:[#allocation0]]
  $region45: #{tpu_custom_call.1} parent=0
    _
  %s6 = ssub.s32 1, %s4
  %s7 = scalar_select 0, %s6, %s4
  $region1: #{tpu_custom_call.1} parent=0
    #allocation3 [shape = 'u8[32768]{0}', space=vmem, size = 0x8000, scoped, tag = 'output window, operand 0']
    #allocation4 [shape = 's32[2]{0}', space=sflag, size = 0x8, scoped, tag = 'scoped memory for tpu_custom_call.1']
    %8 = vsyncpa [#allocation4], 0
    %s9 = scalar_lea.sflag [#allocation4], 1
    %10 = vsyncpa %s9, 0
    loop: start=0, step=1, limit=4
    $region2: #{tpu_custom_call.1} parent=1 // loop_pre_header
      _
    $region3: #{tpu_custom_call.1} parent=1 // loop_header
      %s12 = sphi 0, %s16
      %p13 = scmp.ge.s32.totalorder %s12, 4
      %s22 = sphi 0, %s24
      %s25 = sphi 0, %s22
      %s26 = sphi 0, %s25
      %s42 = sphi 0, %s26
      %s46 = sphi 0, %s46
      %s48 = sphi 0, %s46
      %s49 = sphi 0, %s48
      %s63 = sphi 0, %s49
      %s67 = sphi 0, %s67
      %s69 = sphi 0, %s67
      %s70 = sphi 0, %s69
      %s84 = sphi 0, %s70
      %s90 = sphi 0, %s92
      %s93 = sphi 0, %s90
      %s94 = sphi 0, %s93
      %s110 = sphi 0, %s94
    $region4: #{tpu_custom_call.1} parent=1 // loop_header_branch
      %15 = sbr.rel (%p13) target = $region8
    $region5: #{tpu_custom_call.1} parent=1 // loop_body
      %s17 = ssub.s32 %s12, 1
      %s18 = ssub.s32 %s12, 2
      %s19 = sadd.s32 %s12, 1
      %s20 = ssub.s32 %s12, %s19
      %p21 = scmp.eq.s32.totalorder %s20, 0
      %s23 = sadd.s32 %s22, 1
      %s24 = scalar_select %p21, %s22, %s23
      %p27 = pneg %p21
      %p28 = scmp.eq.s32.totalorder %s12, 1
      %p29 = por %p27, %p28
      %p30 = scmp.ne.s32.totalorder %s22, %s25
      %p31 = scmp.eq.s32.totalorder %s12, 0
      %p32 = por %p30, %p31
      %p33 = scmp.ne.s32.totalorder %s22, %s25
      %p34 = scmp.eq.s32.totalorder %s17, 1
      %p35 = por %p33, %p34
      %p36 = scmp.ne.s32.totalorder %s25, %s26
      %p37 = scmp.eq.s32.totalorder %s17, 0
      %p38 = por %p36, %p37
      %p39 = scmp.ne.s32.totalorder %s25, %s26
      %p40 = scmp.eq.s32.totalorder %s18, 1
      %p41 = por %p39, %p40
      %p43 = scmp.ne.s32.totalorder %s26, %s42
      %p44 = scmp.eq.s32.totalorder %s18, 0
      %p45 = por %p43, %p44
      %s47 = sadd.s32 %s46, 1
      %p50 = scmp.eq.s32.totalorder %s12, 1
      %p51 = scmp.ne.s32.totalorder %s46, %s48
      %p52 = scmp.eq.s32.totalorder %s12, 0
      %p53 = por %p51, %p52
      %p54 = scmp.ne.s32.totalorder %s46, %s48
      %p55 = scmp.eq.s32.totalorder %s17, 1
      %p56 = por %p54, %p55
      %p57 = scmp.ne.s32.totalorder %s48, %s49
      %p58 = scmp.eq.s32.totalorder %s17, 0
      %p59 = por %p57, %p58
      %p60 = scmp.ne.s32.totalorder %s48, %s49
      %p61 = scmp.eq.s32.totalorder %s18, 1
      %p62 = por %p60, %p61
      %p64 = scmp.ne.s32.totalorder %s49, %s63
      %p65 = scmp.eq.s32.totalorder %s18, 0
      %p66 = por %p64, %p65
      %s68 = sadd.s32 %s67, 1
      %p71 = scmp.eq.s32.totalorder %s12, 1
      %p72 = scmp.ne.s32.totalorder %s67, %s69
      %p73 = scmp.eq.s32.totalorder %s12, 0
      %p74 = por %p72, %p73
      %p75 = scmp.ne.s32.totalorder %s67, %s69
      %p76 = scmp.eq.s32.totalorder %s17, 1
      %p77 = por %p75, %p76
      %p78 = scmp.ne.s32.totalorder %s69, %s70
      %p79 = scmp.eq.s32.totalorder %s17, 0
      %p80 = por %p78, %p79
      %p81 = scmp.ne.s32.totalorder %s69, %s70
      %p82 = scmp.eq.s32.totalorder %s18, 1
      %p83 = por %p81, %p82
      %p85 = scmp.ne.s32.totalorder %s70, %s84
      %p86 = scmp.eq.s32.totalorder %s18, 0
      %p87 = por %p85, %p86
      %s88 = ssub.s32 %s12, %s19
      %p89 = scmp.eq.s32.totalorder %s88, 0
      %s91 = sadd.s32 %s90, 1
      %s92 = scalar_select %p89, %s90, %s91
      %p95 = pneg %p89
      %p96 = scmp.eq.s32.totalorder %s12, 1
      %p97 = por %p95, %p96
      %p98 = scmp.ne.s32.totalorder %s90, %s93
      %p99 = scmp.eq.s32.totalorder %s12, 0
      %p100 = por %p98, %p99
      %p101 = scmp.ne.s32.totalorder %s90, %s93
      %p102 = scmp.eq.s32.totalorder %s17, 1
      %p103 = por %p101, %p102
      %p104 = scmp.ne.s32.totalorder %s93, %s94
      %p105 = scmp.eq.s32.totalorder %s17, 0
      %p106 = por %p104, %p105
      %p107 = scmp.ne.s32.totalorder %s93, %s94
      %p108 = scmp.eq.s32.totalorder %s18, 1
      %p109 = por %p107, %p108
      %p111 = scmp.ne.s32.totalorder %s94, %s110
      %p112 = scmp.eq.s32.totalorder %s18, 0
      %p113 = por %p111, %p112
      %p114 = scmp.le.s32.totalorder 1, %s12
      %p115 = scmp.lt.s32.totalorder %s12, 3
      %p116 = pnand %p114, %p115
      %p117 = pneg %p116
      // Predicated region
      $region9: #{tpu_custom_call.1} parent=5 // pred_check
        _
      $region10: #{tpu_custom_call.1} parent=5 // pred_check_branch
        %119 = sbr.rel (%p116) target = $region12
      $region11: #{tpu_custom_call.1} parent=5 // pred_region
        %s120 = ssub.s32 %s12, 1
        // Predicated region
        $region13: #{tpu_custom_call.1} parent=11 // pred_check
          %p121 = pneg %p59
        $region14: #{tpu_custom_call.1} parent=11 // pred_check_branch
          %123 = sbr.rel (%p121) target = $region16
        $region15: #{tpu_custom_call.1} parent=11 // pred_region
          _
        $region16: #{tpu_custom_call.1} parent=11 // pred_fallthru
          _
        // Predicated region
        $region17: #{tpu_custom_call.1} parent=11 // pred_check
          %p124 = pneg %p80
        $region18: #{tpu_custom_call.1} parent=11 // pred_check_branch
          %126 = sbr.rel (%p124) target = $region20
        $region19: #{tpu_custom_call.1} parent=11 // pred_region
          _
        $region20: #{tpu_custom_call.1} parent=11 // pred_fallthru
          _
      $region12: #{tpu_custom_call.1} parent=5 // pred_fallthru
        _
      %p127 = scmp.lt.s32.totalorder %s12, 2
      // Predicated region
      $region21: #{tpu_custom_call.1} parent=5 // pred_check
        %p128 = pneg %p127
      $region22: #{tpu_custom_call.1} parent=5 // pred_check_branch
        %130 = sbr.rel (%p128) target = $region24
      $region23: #{tpu_custom_call.1} parent=5 // pred_region
        // Predicated region
        $region25: #{tpu_custom_call.1} parent=23 // pred_check
          %p131 = pneg %p32
        $region26: #{tpu_custom_call.1} parent=23 // pred_check_branch
          %133 = sbr.rel (%p131) target = $region28
        $region27: #{tpu_custom_call.1} parent=23 // pred_region
          %p134 = scmp.lt.s32.totalorder %s12, 1
          %s135 = scalar_select %p134, %s12, 1
          %s136 = smul.addr %s135, 54
          %s137 = smul.addr %s136, 8
          %s138 = scalar_lea.vmem %s0, %s137
        $region28: #{tpu_custom_call.1} parent=23 // pred_fallthru
          _
      $region24: #{tpu_custom_call.1} parent=5 // pred_fallthru
        _
      %p139 = scmp.le.s32.totalorder 1, %s12
      %p140 = scmp.lt.s32.totalorder %s12, 3
      %p141 = pnand %p139, %p140
      %p142 = pneg %p141
      // Predicated region
      $region29: #{tpu_custom_call.1} parent=5 // pred_check
        _
      $region30: #{tpu_custom_call.1} parent=5 // pred_check_branch
        %144 = sbr.rel (%p141) target = $region32
      $region31: #{tpu_custom_call.1} parent=5 // pred_region
        %s145 = ssub.s32 %s12, 1
        %p146 = scmp.lt.s32.totalorder %s17, 1
        %s147 = scalar_select %p146, %s17, 1
        %s148 = smul.addr %s147, 54
        %s149 = smul.addr %s148, 8
        %s150 = scalar_lea.vmem %s0, %s149
        %p151 = pneg %p38
        %p152 = pneg %p35
        %p153 = pneg %p59
        %p154 = pneg %p56
        %p155 = pneg %p80
        %p156 = pneg %p77
        %p157 = pneg %p106
        %p158 = pneg %p103
        %s159 = sand.u32 %s93, 1
        %s160 = scalar_lea.sflag [#allocation4], %s159
        %s161 = sand.u32 %s93, 1
        %s162 = smul.addr %s161, 32
        %s163 = scalar_lea.vmem [#allocation3], %s162
        %p164 = scmp.lt.s32.totalorder %s17, 1
        %s165 = scalar_select %p164, %s17, 1
        %s166 = smul.addr %s165, 54
        %s167 = smul.addr %s166, 8
        %s168 = scalar_lea.vmem %s0, %s167
        %v169 = vld [vmem:[%s168] sm:$0xff]
        %v170 = vld [vmem:[%s168 + $0x8] sm:$0xff]
        %v171 = vld [vmem:[%s168 + $0x18] sm:$0xff]
        %v172 = vld [vmem:[%s168 + $0x20] sm:$0xff]
        %v173 = vld [vmem:[%s168 + $0x30] sm:$0xff]
        %v174 = vld [vmem:[%s168 + $0x38] sm:$0xff]
        %v175 = vld [vmem:[%s168 + $0x48] sm:$0xff]
        %v176 = vld [vmem:[%s168 + $0x50] sm:$0xff]
        %v177 = vld [vmem:[%s168 + $0x60] sm:$0xff]
        %v178 = vld [vmem:[%s168 + $0x68] sm:$0xff]
        %v179 = vld [vmem:[%s168 + $0x78] sm:$0xff]
        %v180 = vld [vmem:[%s168 + $0x80] sm:$0xff]
        %v181 = vld [vmem:[%s168 + $0x90] sm:$0xff]
        %v182 = vld [vmem:[%s168 + $0x98] sm:$0xff]
        %v183 = vld [vmem:[%s168 + $0xa8] sm:$0xff]
        %v184 = vld [vmem:[%s168 + $0xb0] sm:$0xff]
        %v185 = vld [vmem:[%s168 + $0xc0] sm:$0xff]
        %v186 = vld [vmem:[%s168 + $0xc8] sm:$0xff]
        %v187 = vld [vmem:[%s168 + $0xd8] sm:$0xff]
        %v188 = vld [vmem:[%s168 + $0xe0] sm:$0xff]
        %v189 = vld [vmem:[%s168 + $0xf0] sm:$0xff]
        %v190 = vld [vmem:[%s168 + $0xf8] sm:$0xff]
        %v191 = vld [vmem:[%s168 + $0x108] sm:$0xff]
        %v192 = vld [vmem:[%s168 + $0x110] sm:$0xff]
        %v193 = vld [vmem:[%s168 + $0x120] sm:$0xff]
        %v194 = vld [vmem:[%s168 + $0x128] sm:$0xff]
        %v195 = vld [vmem:[%s168 + $0x138] sm:$0xff]
        %v196 = vld [vmem:[%s168 + $0x140] sm:$0xff]
        %v197 = vld [vmem:[%s168 + $0x150] sm:$0xff]
        %v198 = vld [vmem:[%s168 + $0x158] sm:$0xff]
        %v199 = vld [vmem:[%s168 + $0x168] sm:$0xff]
        %v200 = vld [vmem:[%s168 + $0x170] sm:$0xff]
        %v201 = vld [vmem:[%s168 + $0x180] sm:$0xff]
        %v202 = vld [vmem:[%s168 + $0x188] sm:$0xff]
        %v203 = vld [vmem:[%s168 + $0x198] sm:$0xff]
        %v204 = vld [vmem:[%s168 + $0x1a0] sm:$0xff]
        %vm205 = vcmask 64512
        %206 = vst.msk [vmem:[#allocation2] sm:$0xff] %vm205, %v169
        %207 = vst.msk [vmem:[#allocation2 + $0x8] sm:$0xff] %vm205, %v170
        %208 = vst.msk [vmem:[#allocation2 + $0x10] sm:$0xff] %vm205, %v171
        %209 = vst.msk [vmem:[#allocation2 + $0x18] sm:$0xff] %vm205, %v172
        %210 = vst.msk [vmem:[#allocation2 + $0x20] sm:$0xff] %vm205, %v173
        %211 = vst.msk [vmem:[#allocation2 + $0x28] sm:$0xff] %vm205, %v174
        %212 = vst.msk [vmem:[#allocation2 + $0x30] sm:$0xff] %vm205, %v175
        %213 = vst.msk [vmem:[#allocation2 + $0x38] sm:$0xff] %vm205, %v176
        %214 = vst.msk [vmem:[#allocation2 + $0x40] sm:$0xff] %vm205, %v177
        %215 = vst.msk [vmem:[#allocation2 + $0x48] sm:$0xff] %vm205, %v178
        %216 = vst.msk [vmem:[#allocation2 + $0x50] sm:$0xff] %vm205, %v179
        %217 = vst.msk [vmem:[#allocation2 + $0x58] sm:$0xff] %vm205, %v180
        %218 = vst.msk [vmem:[#allocation2 + $0x60] sm:$0xff] %vm205, %v181
        %219 = vst.msk [vmem:[#allocation2 + $0x68] sm:$0xff] %vm205, %v182
        %220 = vst.msk [vmem:[#allocation2 + $0x70] sm:$0xff] %vm205, %v183
        %221 = vst.msk [vmem:[#allocation2 + $0x78] sm:$0xff] %vm205, %v184
        %222 = vst.msk [vmem:[#allocation2 + $0x80] sm:$0xff] %vm205, %v185
        %223 = vst.msk [vmem:[#allocation2 + $0x88] sm:$0xff] %vm205, %v186
        %224 = vst.msk [vmem:[#allocation2 + $0x90] sm:$0xff] %vm205, %v187
        %225 = vst.msk [vmem:[#allocation2 + $0x98] sm:$0xff] %vm205, %v188
        %226 = vst.msk [vmem:[#allocation2 + $0xa0] sm:$0xff] %vm205, %v189
        %227 = vst.msk [vmem:[#allocation2 + $0xa8] sm:$0xff] %vm205, %v190
        %228 = vst.msk [vmem:[#allocation2 + $0xb0] sm:$0xff] %vm205, %v191
        %229 = vst.msk [vmem:[#allocation2 + $0xb8] sm:$0xff] %vm205, %v192
        %230 = vst.msk [vmem:[#allocation2 + $0xc0] sm:$0xff] %vm205, %v193
        %231 = vst.msk [vmem:[#allocation2 + $0xc8] sm:$0xff] %vm205, %v194
        %232 = vst.msk [vmem:[#allocation2 + $0xd0] sm:$0xff] %vm205, %v195
        %233 = vst.msk [vmem:[#allocation2 + $0xd8] sm:$0xff] %vm205, %v196
        %234 = vst.msk [vmem:[#allocation2 + $0xe0] sm:$0xff] %vm205, %v197
        %235 = vst.msk [vmem:[#allocation2 + $0xe8] sm:$0xff] %vm205, %v198
        %236 = vst.msk [vmem:[#allocation2 + $0xf0] sm:$0xff] %vm205, %v199
        %237 = vst.msk [vmem:[#allocation2 + $0xf8] sm:$0xff] %vm205, %v200
        %238 = vst.msk [vmem:[#allocation2 + $0x100] sm:$0xff] %vm205, %v201
        %239 = vst.msk [vmem:[#allocation2 + $0x108] sm:$0xff] %vm205, %v202
        %240 = vst.msk [vmem:[#allocation2 + $0x110] sm:$0xff] %vm205, %v203
        %241 = vst.msk [vmem:[#allocation2 + $0x118] sm:$0xff] %vm205, %v204
        %v242 = vld [vmem:[%s168 + $0x1] sm:$0xff]
        %v243 = vld [vmem:[%s168 + $0x9] sm:$0xff]
        %v244 = vld [vmem:[%s168 + $0x19] sm:$0xff]
        %v245 = vld [vmem:[%s168 + $0x21] sm:$0xff]
        %v246 = vld [vmem:[%s168 + $0x31] sm:$0xff]
        %v247 = vld [vmem:[%s168 + $0x39] sm:$0xff]
        %v248 = vld [vmem:[%s168 + $0x49] sm:$0xff]
        %v249 = vld [vmem:[%s168 + $0x51] sm:$0xff]
        %v250 = vld [vmem:[%s168 + $0x61] sm:$0xff]
        %v251 = vld [vmem:[%s168 + $0x69] sm:$0xff]
        %v252 = vld [vmem:[%s168 + $0x79] sm:$0xff]
        %v253 = vld [vmem:[%s168 + $0x81] sm:$0xff]
        %v254 = vld [vmem:[%s168 + $0x91] sm:$0xff]
        %v255 = vld [vmem:[%s168 + $0x99] sm:$0xff]
        %v256 = vld [vmem:[%s168 + $0xa9] sm:$0xff]
        %v257 = vld [vmem:[%s168 + $0xb1] sm:$0xff]
        %v258 = vld [vmem:[%s168 + $0xc1] sm:$0xff]
        %v259 = vld [vmem:[%s168 + $0xc9] sm:$0xff]
        %v260 = vld [vmem:[%s168 + $0xd9] sm:$0xff]
        %v261 = vld [vmem:[%s168 + $0xe1] sm:$0xff]
        %v262 = vld [vmem:[%s168 + $0xf1] sm:$0xff]
        %v263 = vld [vmem:[%s168 + $0xf9] sm:$0xff]
        %v264 = vld [vmem:[%s168 + $0x109] sm:$0xff]
        %v265 = vld [vmem:[%s168 + $0x111] sm:$0xff]
        %v266 = vld [vmem:[%s168 + $0x121] sm:$0xff]
        %v267 = vld [vmem:[%s168 + $0x129] sm:$0xff]
        %v268 = vld [vmem:[%s168 + $0x139] sm:$0xff]
        %v269 = vld [vmem:[%s168 + $0x141] sm:$0xff]
        %v270 = vld [vmem:[%s168 + $0x151] sm:$0xff]
        %v271 = vld [vmem:[%s168 + $0x159] sm:$0xff]
        %v272 = vld [vmem:[%s168 + $0x169] sm:$0xff]
        %v273 = vld [vmem:[%s168 + $0x171] sm:$0xff]
        %v274 = vld [vmem:[%s168 + $0x181] sm:$0xff]
        %v275 = vld [vmem:[%s168 + $0x189] sm:$0xff]
        %v276 = vld [vmem:[%s168 + $0x199] sm:$0xff]
        %v277 = vld [vmem:[%s168 + $0x1a1] sm:$0xff]
        %314 = vrot.lane.b32.xlu0 %v242, 8
        %v315 = vpop.permute.xlu0 %314
        %316 = vrot.lane.b32.xlu0 %v243, 8
        %v317 = vpop.permute.xlu0 %316
        %318 = vrot.lane.b32.xlu0 %v244, 8
        %v319 = vpop.permute.xlu0 %318
        %320 = vrot.lane.b32.xlu0 %v245, 8
        %v321 = vpop.permute.xlu0 %320
        %322 = vrot.lane.b32.xlu0 %v246, 8
        %v323 = vpop.permute.xlu0 %322
        %324 = vrot.lane.b32.xlu0 %v247, 8
        %v325 = vpop.permute.xlu0 %324
        %326 = vrot.lane.b32.xlu0 %v248, 8
        %v327 = vpop.permute.xlu0 %326
        %328 = vrot.lane.b32.xlu0 %v249, 8
        %v329 = vpop.permute.xlu0 %328
        %330 = vrot.lane.b32.xlu0 %v250, 8
        %v331 = vpop.permute.xlu0 %330
        %332 = vrot.lane.b32.xlu0 %v251, 8
        %v333 = vpop.permute.xlu0 %332
        %334 = vrot.lane.b32.xlu0 %v252, 8
        %v335 = vpop.permute.xlu0 %334
        %336 = vrot.lane.b32.xlu0 %v253, 8
        %v337 = vpop.permute.xlu0 %336
        %338 = vrot.lane.b32.xlu0 %v254, 8
        %v339 = vpop.permute.xlu0 %338
        %340 = vrot.lane.b32.xlu0 %v255, 8
        %v341 = vpop.permute.xlu0 %340
        %342 = vrot.lane.b32.xlu0 %v256, 8
        %v343 = vpop.permute.xlu0 %342
        %344 = vrot.lane.b32.xlu0 %v257, 8
        %v345 = vpop.permute.xlu0 %344
        %346 = vrot.lane.b32.xlu0 %v258, 8
        %v347 = vpop.permute.xlu0 %346
        %348 = vrot.lane.b32.xlu0 %v259, 8
        %v349 = vpop.permute.xlu0 %348
        %350 = vrot.lane.b32.xlu0 %v260, 8
        %v351 = vpop.permute.xlu0 %350
        %352 = vrot.lane.b32.xlu0 %v261, 8
        %v353 = vpop.permute.xlu0 %352
        %354 = vrot.lane.b32.xlu0 %v262, 8
        %v355 = vpop.permute.xlu0 %354
        %356 = vrot.lane.b32.xlu0 %v263, 8
        %v357 = vpop.permute.xlu0 %356
        %358 = vrot.lane.b32.xlu0 %v264, 8
        %v359 = vpop.permute.xlu0 %358
        %360 = vrot.lane.b32.xlu0 %v265, 8
        %v361 = vpop.permute.xlu0 %360
        %362 = vrot.lane.b32.xlu0 %v266, 8
        %v363 = vpop.permute.xlu0 %362
        %364 = vrot.lane.b32.xlu0 %v267, 8
        %v365 = vpop.permute.xlu0 %364
        %366 = vrot.lane.b32.xlu0 %v268, 8
        %v367 = vpop.permute.xlu0 %366
        %368 = vrot.lane.b32.xlu0 %v269, 8
        %v369 = vpop.permute.xlu0 %368
        %370 = vrot.lane.b32.xlu0 %v270, 8
        %v371 = vpop.permute.xlu0 %370
        %372 = vrot.lane.b32.xlu0 %v271, 8
        %v373 = vpop.permute.xlu0 %372
        %374 = vrot.lane.b32.xlu0 %v272, 8
        %v375 = vpop.permute.xlu0 %374
        %376 = vrot.lane.b32.xlu0 %v273, 8
        %v377 = vpop.permute.xlu0 %376
        %378 = vrot.lane.b32.xlu0 %v274, 8
        %v379 = vpop.permute.xlu0 %378
        %380 = vrot.lane.b32.xlu0 %v275, 8
        %v381 = vpop.permute.xlu0 %380
        %382 = vrot.lane.b32.xlu0 %v276, 8
        %v383 = vpop.permute.xlu0 %382
        %384 = vrot.lane.b32.xlu0 %v277, 8
        %v385 = vpop.permute.xlu0 %384
        %vm422 = vcmask 130112
        %423 = vst.msk [vmem:[#allocation2] sm:$0xff] %vm422, %v315
        %424 = vst.msk [vmem:[#allocation2 + $0x8] sm:$0xff] %vm422, %v317
        %425 = vst.msk [vmem:[#allocation2 + $0x10] sm:$0xff] %vm422, %v319
        %426 = vst.msk [vmem:[#allocation2 + $0x18] sm:$0xff] %vm422, %v321
        %427 = vst.msk [vmem:[#allocation2 + $0x20] sm:$0xff] %vm422, %v323
        %428 = vst.msk [vmem:[#allocation2 + $0x28] sm:$0xff] %vm422, %v325
        %429 = vst.msk [vmem:[#allocation2 + $0x30] sm:$0xff] %vm422, %v327
        %430 = vst.msk [vmem:[#allocation2 + $0x38] sm:$0xff] %vm422, %v329
        %431 = vst.msk [vmem:[#allocation2 + $0x40] sm:$0xff] %vm422, %v331
        %432 = vst.msk [vmem:[#allocation2 + $0x48] sm:$0xff] %vm422, %v333
        %433 = vst.msk [vmem:[#allocation2 + $0x50] sm:$0xff] %vm422, %v335
        %434 = vst.msk [vmem:[#allocation2 + $0x58] sm:$0xff] %vm422, %v337
        %435 = vst.msk [vmem:[#allocation2 + $0x60] sm:$0xff] %vm422, %v339
        %436 = vst.msk [vmem:[#allocation2 + $0x68] sm:$0xff] %vm422, %v341
        %437 = vst.msk [vmem:[#allocation2 + $0x70] sm:$0xff] %vm422, %v343
        %438 = vst.msk [vmem:[#allocation2 + $0x78] sm:$0xff] %vm422, %v345
        %439 = vst.msk [vmem:[#allocation2 + $0x80] sm:$0xff] %vm422, %v347
        %440 = vst.msk [vmem:[#allocation2 + $0x88] sm:$0xff] %vm422, %v349
        %441 = vst.msk [vmem:[#allocation2 + $0x90] sm:$0xff] %vm422, %v351
        %442 = vst.msk [vmem:[#allocation2 + $0x98] sm:$0xff] %vm422, %v353
        %443 = vst.msk [vmem:[#allocation2 + $0xa0] sm:$0xff] %vm422, %v355
        %444 = vst.msk [vmem:[#allocation2 + $0xa8] sm:$0xff] %vm422, %v357
        %445 = vst.msk [vmem:[#allocation2 + $0xb0] sm:$0xff] %vm422, %v359
        %446 = vst.msk [vmem:[#allocation2 + $0xb8] sm:$0xff] %vm422, %v361
        %447 = vst.msk [vmem:[#allocation2 + $0xc0] sm:$0xff] %vm422, %v363
        %448 = vst.msk [vmem:[#allocation2 + $0xc8] sm:$0xff] %vm422, %v365
        %449 = vst.msk [vmem:[#allocation2 + $0xd0] sm:$0xff] %vm422, %v367
        %450 = vst.msk [vmem:[#allocation2 + $0xd8] sm:$0xff] %vm422, %v369
        %451 = vst.msk [vmem:[#allocation2 + $0xe0] sm:$0xff] %vm422, %v371
        %452 = vst.msk [vmem:[#allocation2 + $0xe8] sm:$0xff] %vm422, %v373
        %453 = vst.msk [vmem:[#allocation2 + $0xf0] sm:$0xff] %vm422, %v375
        %454 = vst.msk [vmem:[#allocation2 + $0xf8] sm:$0xff] %vm422, %v377
        %455 = vst.msk [vmem:[#allocation2 + $0x100] sm:$0xff] %vm422, %v379
        %456 = vst.msk [vmem:[#allocation2 + $0x108] sm:$0xff] %vm422, %v381
        %457 = vst.msk [vmem:[#allocation2 + $0x110] sm:$0xff] %vm422, %v383
        %458 = vst.msk [vmem:[#allocation2 + $0x118] sm:$0xff] %vm422, %v385
        %v459 = vld [vmem:[%s168 + $0x2] sm:$0xff]
        %v460 = vld [vmem:[%s168 + $0xa] sm:$0xff]
        %v461 = vld [vmem:[%s168 + $0x1a] sm:$0xff]
        %v462 = vld [vmem:[%s168 + $0x22] sm:$0xff]
        %v463 = vld [vmem:[%s168 + $0x32] sm:$0xff]
        %v464 = vld [vmem:[%s168 + $0x3a] sm:$0xff]
        %v465 = vld [vmem:[%s168 + $0x4a] sm:$0xff]
        %v466 = vld [vmem:[%s168 + $0x52] sm:$0xff]
        %v467 = vld [vmem:[%s168 + $0x62] sm:$0xff]
        %v468 = vld [vmem:[%s168 + $0x6a] sm:$0xff]
        %v469 = vld [vmem:[%s168 + $0x7a] sm:$0xff]
        %v470 = vld [vmem:[%s168 + $0x82] sm:$0xff]
        %v471 = vld [vmem:[%s168 + $0x92] sm:$0xff]
        %v472 = vld [vmem:[%s168 + $0x9a] sm:$0xff]
        %v473 = vld [vmem:[%s168 + $0xaa] sm:$0xff]
        %v474 = vld [vmem:[%s168 + $0xb2] sm:$0xff]
        %v475 = vld [vmem:[%s168 + $0xc2] sm:$0xff]
        %v476 = vld [vmem:[%s168 + $0xca] sm:$0xff]
        %v477 = vld [vmem:[%s168 + $0xda] sm:$0xff]
        %v478 = vld [vmem:[%s168 + $0xe2] sm:$0xff]
        %v479 = vld [vmem:[%s168 + $0xf2] sm:$0xff]
        %v480 = vld [vmem:[%s168 + $0xfa] sm:$0xff]
        %v481 = vld [vmem:[%s168 + $0x10a] sm:$0xff]
        %v482 = vld [vmem:[%s168 + $0x112] sm:$0xff]
        %v483 = vld [vmem:[%s168 + $0x122] sm:$0xff]
        %v484 = vld [vmem:[%s168 + $0x12a] sm:$0xff]
        %v485 = vld [vmem:[%s168 + $0x13a] sm:$0xff]
        %v486 = vld [vmem:[%s168 + $0x142] sm:$0xff]
        %v487 = vld [vmem:[%s168 + $0x152] sm:$0xff]
        %v488 = vld [vmem:[%s168 + $0x15a] sm:$0xff]
        %v489 = vld [vmem:[%s168 + $0x16a] sm:$0xff]
        %v490 = vld [vmem:[%s168 + $0x172] sm:$0xff]
        %v491 = vld [vmem:[%s168 + $0x182] sm:$0xff]
        %v492 = vld [vmem:[%s168 + $0x18a] sm:$0xff]
        %v493 = vld [vmem:[%s168 + $0x19a] sm:$0xff]
        %v494 = vld [vmem:[%s168 + $0x1a2] sm:$0xff]
        %531 = vrot.lane.b32.xlu0 %v459, 16
        %v532 = vpop.permute.xlu0 %531
        %533 = vrot.lane.b32.xlu0 %v460, 16
        %v534 = vpop.permute.xlu0 %533
        %535 = vrot.lane.b32.xlu0 %v461, 16
        %v536 = vpop.permute.xlu0 %535
        %537 = vrot.lane.b32.xlu0 %v462, 16
        %v538 = vpop.permute.xlu0 %537
        %539 = vrot.lane.b32.xlu0 %v463, 16
        %v540 = vpop.permute.xlu0 %539
        %541 = vrot.lane.b32.xlu0 %v464, 16
        %v542 = vpop.permute.xlu0 %541
        %543 = vrot.lane.b32.xlu0 %v465, 16
        %v544 = vpop.permute.xlu0 %543
        %545 = vrot.lane.b32.xlu0 %v466, 16
        %v546 = vpop.permute.xlu0 %545
        %547 = vrot.lane.b32.xlu0 %v467, 16
        %v548 = vpop.permute.xlu0 %547
        %549 = vrot.lane.b32.xlu0 %v468, 16
        %v550 = vpop.permute.xlu0 %549
        %551 = vrot.lane.b32.xlu0 %v469, 16
        %v552 = vpop.permute.xlu0 %551
        %553 = vrot.lane.b32.xlu0 %v470, 16
        %v554 = vpop.permute.xlu0 %553
        %555 = vrot.lane.b32.xlu0 %v471, 16
        %v556 = vpop.permute.xlu0 %555
        %557 = vrot.lane.b32.xlu0 %v472, 16
        %v558 = vpop.permute.xlu0 %557
        %559 = vrot.lane.b32.xlu0 %v473, 16
        %v560 = vpop.permute.xlu0 %559
        %561 = vrot.lane.b32.xlu0 %v474, 16
        %v562 = vpop.permute.xlu0 %561
        %563 = vrot.lane.b32.xlu0 %v475, 16
        %v564 = vpop.permute.xlu0 %563
        %565 = vrot.lane.b32.xlu0 %v476, 16
        %v566 = vpop.permute.xlu0 %565
        %567 = vrot.lane.b32.xlu0 %v477, 16
        %v568 = vpop.permute.xlu0 %567
        %569 = vrot.lane.b32.xlu0 %v478, 16
        %v570 = vpop.permute.xlu0 %569
        %571 = vrot.lane.b32.xlu0 %v479, 16
        %v572 = vpop.permute.xlu0 %571
        %573 = vrot.lane.b32.xlu0 %v480, 16
        %v574 = vpop.permute.xlu0 %573
        %575 = vrot.lane.b32.xlu0 %v481, 16
        %v576 = vpop.permute.xlu0 %575
        %577 = vrot.lane.b32.xlu0 %v482, 16
        %v578 = vpop.permute.xlu0 %577
        %579 = vrot.lane.b32.xlu0 %v483, 16
        %v580 = vpop.permute.xlu0 %579
        %581 = vrot.lane.b32.xlu0 %v484, 16
        %v582 = vpop.permute.xlu0 %581
        %583 = vrot.lane.b32.xlu0 %v485, 16
        %v584 = vpop.permute.xlu0 %583
        %585 = vrot.lane.b32.xlu0 %v486, 16
        %v586 = vpop.permute.xlu0 %585
        %587 = vrot.lane.b32.xlu0 %v487, 16
        %v588 = vpop.permute.xlu0 %587
        %589 = vrot.lane.b32.xlu0 %v488, 16
        %v590 = vpop.permute.xlu0 %589
        %591 = vrot.lane.b32.xlu0 %v489, 16
        %v592 = vpop.permute.xlu0 %591
        %593 = vrot.lane.b32.xlu0 %v490, 16
        %v594 = vpop.permute.xlu0 %593
        %595 = vrot.lane.b32.xlu0 %v491, 16
        %v596 = vpop.permute.xlu0 %595
        %597 = vrot.lane.b32.xlu0 %v492, 16
        %v598 = vpop.permute.xlu0 %597
        %599 = vrot.lane.b32.xlu0 %v493, 16
        %v600 = vpop.permute.xlu0 %599
        %601 = vrot.lane.b32.xlu0 %v494, 16
        %v602 = vpop.permute.xlu0 %601
        %vm639 = vcmask 195712
        %640 = vst.msk [vmem:[#allocation2] sm:$0xff] %vm639, %v532
        %641 = vst.msk [vmem:[#allocation2 + $0x8] sm:$0xff] %vm639, %v534
        %642 = vst.msk [vmem:[#allocation2 + $0x10] sm:$0xff] %vm639, %v536
        %643 = vst.msk [vmem:[#allocation2 + $0x18] sm:$0xff] %vm639, %v538
        %644 = vst.msk [vmem:[#allocation2 + $0x20] sm:$0xff] %vm639, %v540
        %645 = vst.msk [vmem:[#allocation2 + $0x28] sm:$0xff] %vm639, %v542
        %646 = vst.msk [vmem:[#allocation2 + $0x30] sm:$0xff] %vm639, %v544
        %647 = vst.msk [vmem:[#allocation2 + $0x38] sm:$0xff] %vm639, %v546
        %648 = vst.msk [vmem:[#allocation2 + $0x40] sm:$0xff] %vm639, %v548
        %649 = vst.msk [vmem:[#allocation2 + $0x48] sm:$0xff] %vm639, %v550
        %650 = vst.msk [vmem:[#allocation2 + $0x50] sm:$0xff] %vm639, %v552
        %651 = vst.msk [vmem:[#allocation2 + $0x58] sm:$0xff] %vm639, %v554
        %652 = vst.msk [vmem:[#allocation2 + $0x60] sm:$0xff] %vm639, %v556
        %653 = vst.msk [vmem:[#allocation2 + $0x68] sm:$0xff] %vm639, %v558
        %654 = vst.msk [vmem:[#allocation2 + $0x70] sm:$0xff] %vm639, %v560
        %655 = vst.msk [vmem:[#allocation2 + $0x78] sm:$0xff] %vm639, %v562
        %656 = vst.msk [vmem:[#allocation2 + $0x80] sm:$0xff] %vm639, %v564
        %657 = vst.msk [vmem:[#allocation2 + $0x88] sm:$0xff] %vm639, %v566
        %658 = vst.msk [vmem:[#allocation2 + $0x90] sm:$0xff] %vm639, %v568
        %659 = vst.msk [vmem:[#allocation2 + $0x98] sm:$0xff] %vm639, %v570
        %660 = vst.msk [vmem:[#allocation2 + $0xa0] sm:$0xff] %vm639, %v572
        %661 = vst.msk [vmem:[#allocation2 + $0xa8] sm:$0xff] %vm639, %v574
        %662 = vst.msk [vmem:[#allocation2 + $0xb0] sm:$0xff] %vm639, %v576
        %663 = vst.msk [vmem:[#allocation2 + $0xb8] sm:$0xff] %vm639, %v578
        %664 = vst.msk [vmem:[#allocation2 + $0xc0] sm:$0xff] %vm639, %v580
        %665 = vst.msk [vmem:[#allocation2 + $0xc8] sm:$0xff] %vm639, %v582
        %666 = vst.msk [vmem:[#allocation2 + $0xd0] sm:$0xff] %vm639, %v584
        %667 = vst.msk [vmem:[#allocation2 + $0xd8] sm:$0xff] %vm639, %v586
        %668 = vst.msk [vmem:[#allocation2 + $0xe0] sm:$0xff] %vm639, %v588
        %669 = vst.msk [vmem:[#allocation2 + $0xe8] sm:$0xff] %vm639, %v590
        %670 = vst.msk [vmem:[#allocation2 + $0xf0] sm:$0xff] %vm639, %v592
        %671 = vst.msk [vmem:[#allocation2 + $0xf8] sm:$0xff] %vm639, %v594
        %672 = vst.msk [vmem:[#allocation2 + $0x100] sm:$0xff] %vm639, %v596
        %673 = vst.msk [vmem:[#allocation2 + $0x108] sm:$0xff] %vm639, %v598
        %674 = vst.msk [vmem:[#allocation2 + $0x110] sm:$0xff] %vm639, %v600
        %675 = vst.msk [vmem:[#allocation2 + $0x118] sm:$0xff] %vm639, %v602
        %v676 = vld [vmem:[%s2] sm:$0xff]
        %v677 = vld [vmem:[#allocation2] sm:$0xff]
        %v678 = vld [vmem:[#allocation2 + $0x8] sm:$0xff]
        %v679 = vld [vmem:[#allocation2 + $0x10] sm:$0xff]
        %v680 = vld [vmem:[#allocation2 + $0x18] sm:$0xff]
        %v681 = vld [vmem:[#allocation2 + $0x20] sm:$0xff]
        %v682 = vld [vmem:[#allocation2 + $0x28] sm:$0xff]
        %v683 = vld [vmem:[#allocation2 + $0x30] sm:$0xff]
        %v684 = vld [vmem:[#allocation2 + $0x38] sm:$0xff]
        %v685 = vld [vmem:[#allocation2 + $0x40] sm:$0xff]
        %v686 = vld [vmem:[#allocation2 + $0x48] sm:$0xff]
        %v687 = vld [vmem:[#allocation2 + $0x50] sm:$0xff]
        %v688 = vld [vmem:[#allocation2 + $0x58] sm:$0xff]
        %v689 = vld [vmem:[#allocation2 + $0x60] sm:$0xff]
        %v690 = vld [vmem:[#allocation2 + $0x68] sm:$0xff]
        %v691 = vld [vmem:[#allocation2 + $0x70] sm:$0xff]
        %v692 = vld [vmem:[#allocation2 + $0x78] sm:$0xff]
        %v693 = vld [vmem:[#allocation2 + $0x80] sm:$0xff]
        %v694 = vld [vmem:[#allocation2 + $0x88] sm:$0xff]
        %v695 = vld [vmem:[#allocation2 + $0x90] sm:$0xff]
        %v696 = vld [vmem:[#allocation2 + $0x98] sm:$0xff]
        %v697 = vld [vmem:[#allocation2 + $0xa0] sm:$0xff]
        %v698 = vld [vmem:[#allocation2 + $0xa8] sm:$0xff]
        %v699 = vld [vmem:[#allocation2 + $0xb0] sm:$0xff]
        %v700 = vld [vmem:[#allocation2 + $0xb8] sm:$0xff]
        %v701 = vld [vmem:[#allocation2 + $0xc0] sm:$0xff]
        %v702 = vld [vmem:[#allocation2 + $0xc8] sm:$0xff]
        %v703 = vld [vmem:[#allocation2 + $0xd0] sm:$0xff]
        %v704 = vld [vmem:[#allocation2 + $0xd8] sm:$0xff]
        %v705 = vld [vmem:[#allocation2 + $0xe0] sm:$0xff]
        %v706 = vld [vmem:[#allocation2 + $0xe8] sm:$0xff]
        %v707 = vld [vmem:[#allocation2 + $0xf0] sm:$0xff]
        %v708 = vld [vmem:[#allocation2 + $0xf8] sm:$0xff]
        %v709 = vld [vmem:[#allocation2 + $0x100] sm:$0xff]
        %v710 = vld [vmem:[#allocation2 + $0x108] sm:$0xff]
        %v711 = vld [vmem:[%s1] sm:$0xff]
        %s712 = scalar_lea.vmem %s1, 8
        %v713 = vld [vmem:[%s712] sm:$0xff]
        %vm714 = vcmask 195584
        %v716 = vsel %vm714, %v713, 0
        %v719 = vsel %vm714, %v679, 0
        %v722 = vsel %vm714, %v680, 0
        %v725 = vsel %vm714, %v681, 0
        %v728 = vsel %vm714, %v682, 0
        %v731 = vsel %vm714, %v683, 0
        %v734 = vsel %vm714, %v684, 0
        %v737 = vsel %vm714, %v685, 0
        %v740 = vsel %vm714, %v686, 0
        %v743 = vsel %vm714, %v687, 0
        %v746 = vsel %vm714, %v688, 0
        %v749 = vsel %vm714, %v689, 0
        %v752 = vsel %vm714, %v690, 0
        %v755 = vsel %vm714, %v691, 0
        %v758 = vsel %vm714, %v692, 0
        %v761 = vsel %vm714, %v693, 0
        %v764 = vsel %vm714, %v694, 0
        %v767 = vsel %vm714, %v695, 0
        %v770 = vsel %vm714, %v696, 0
        %v773 = vsel %vm714, %v697, 0
        %v776 = vsel %vm714, %v698, 0
        %v779 = vsel %vm714, %v699, 0
        %v782 = vsel %vm714, %v700, 0
        %v785 = vsel %vm714, %v701, 0
        %v788 = vsel %vm714, %v702, 0
        %v791 = vsel %vm714, %v703, 0
        %v794 = vsel %vm714, %v704, 0
        %v797 = vsel %vm714, %v705, 0
        %v800 = vsel %vm714, %v706, 0
        %v803 = vsel %vm714, %v707, 0
        %v806 = vsel %vm714, %v708, 0
        %v809 = vsel %vm714, %v709, 0
        %v812 = vsel %vm714, %v710, 0
        %814 = vmatprep.subr.mxu0 0.0
        %815 = vmatpush1.xpose.msra.mxu0 %v719
        %816 = vmatprep.subr.mxu0 0.0
        %817 = vmatpush1.xpose.msra.mxu0 %v722
        %818 = vmatprep.subr.mxu0 0.0
        %819 = vmatpush1.xpose.msra.mxu0 %v725
        %820 = vmatprep.subr.mxu0 0.0
        %821 = vmatpush1.xpose.msra.mxu0 %v728
        %822 = vmatprep.subr.mxu0 0.0
        %823 = vmatpush1.xpose.msra.mxu0 %v731
        %824 = vmatprep.subr.mxu0 0.0
        %825 = vmatpush1.xpose.msra.mxu0 %v734
        %826 = vmatprep.subr.mxu0 0.0
        %827 = vmatpush1.xpose.msra.mxu0 %v737
        %828 = vmatprep.subr.mxu0 0.0
        %829 = vmatpush1.xpose.msra.mxu0 %v740
        %830 = vmatprep.subr.mxu0 0.0
        %831 = vmatpush1.xpose.msra.mxu0 %v743
        %832 = vmatprep.subr.mxu0 0.0
        %833 = vmatpush1.xpose.msra.mxu0 %v746
        %834 = vmatprep.subr.mxu0 0.0
        %835 = vmatpush1.xpose.msra.mxu0 %v749
        %836 = vmatprep.subr.mxu0 0.0
        %837 = vmatpush1.xpose.msra.mxu0 %v752
        %838 = vmatprep.subr.mxu0 0.0
        %839 = vmatpush1.xpose.msra.mxu0 %v755
        %840 = vmatprep.subr.mxu0 0.0
        %841 = vmatpush1.xpose.msra.mxu0 %v758
        %842 = vmatprep.subr.mxu0 0.0
        %843 = vmatpush1.xpose.msra.mxu0 %v761
        %844 = vmatprep.subr.mxu0 0.0
        %845 = vmatpush1.xpose.msra.mxu0 %v764
        %846 = vmatprep.subr.mxu0 0.0
        %847 = vmatpush1.xpose.msra.mxu0 %v767
        %848 = vmatprep.subr.mxu0 0.0
        %849 = vmatpush1.xpose.msra.mxu0 %v770
        %850 = vmatprep.subr.mxu0 0.0
        %851 = vmatpush1.xpose.msra.mxu0 %v773
        %852 = vmatprep.subr.mxu0 0.0
        %853 = vmatpush1.xpose.msra.mxu0 %v776
        %854 = vmatprep.subr.mxu0 0.0
        %855 = vmatpush1.xpose.msra.mxu0 %v779
        %856 = vmatprep.subr.mxu0 0.0
        %857 = vmatpush1.xpose.msra.mxu0 %v782
        %858 = vmatprep.subr.mxu0 0.0
        %859 = vmatpush1.xpose.msra.mxu0 %v785
        %860 = vmatprep.subr.mxu0 0.0
        %861 = vmatpush1.xpose.msra.mxu0 %v788
        %862 = vmatprep.subr.mxu0 0.0
        %863 = vmatpush1.xpose.msra.mxu0 %v791
        %864 = vmatprep.subr.mxu0 0.0
        %865 = vmatpush1.xpose.msra.mxu0 %v794
        %866 = vmatprep.subr.mxu0 0.0
        %867 = vmatpush1.xpose.msra.mxu0 %v797
        %868 = vmatprep.subr.mxu0 0.0
        %869 = vmatpush1.xpose.msra.mxu0 %v800
        %870 = vmatprep.subr.mxu0 0.0
        %871 = vmatpush1.xpose.msra.mxu0 %v803
        %872 = vmatprep.subr.mxu0 0.0
        %873 = vmatpush1.xpose.msra.mxu0 %v806
        %874 = vmatprep.subr.mxu0 0.0
        %875 = vmatpush1.xpose.msra.mxu0 %v809
        %876 = vmatprep.subr.mxu0 0.0
        %877 = vmatpush1.xpose.msra.mxu0 %v812
        %878 = vmatprep.mubr.f32.mxu0 0.0
        %879 = vmatmul.mubr.f32.gmra.mrb[0].mxu0 %v716
        %v880 = vpop.f32.mrb[0].mxu0
        %v881 = vadd.f32 0.0, %v880
        %v882 = vpop.f32.mrb[0].mxu0
        %v883 = vadd.f32 0.0, %v882
        %884 = vdwg.mxu0
        %v886 = vsel %vm714, %v711, 0
        %v889 = vsel %vm714, %v677, 0
        %v892 = vsel %vm714, %v678, 0
        %894 = vmatprep.subr.mxu0 0.0
        %895 = vmatpush1.xpose.msra.mxu0 %v889
        %896 = vmatprep.subr.mxu0 0.0
        %897 = vmatpush1.xpose.msra.mxu0 %v892
        %898 = vmatprep.subr.mxu0 0.0
        %899 = vmatpush1.xpose.msra.mxu0 %v719
        %900 = vmatprep.subr.mxu0 0.0
        %901 = vmatpush1.xpose.msra.mxu0 %v722
        %902 = vmatprep.subr.mxu0 0.0
        %903 = vmatpush1.xpose.msra.mxu0 %v725
        %904 = vmatprep.subr.mxu0 0.0
        %905 = vmatpush1.xpose.msra.mxu0 %v728
        %906 = vmatprep.subr.mxu0 0.0
        %907 = vmatpush1.xpose.msra.mxu0 %v731
        %908 = vmatprep.subr.mxu0 0.0
        %909 = vmatpush1.xpose.msra.mxu0 %v734
        %910 = vmatprep.subr.mxu0 0.0
        %911 = vmatpush1.xpose.msra.mxu0 %v737
        %912 = vmatprep.subr.mxu0 0.0
        %913 = vmatpush1.xpose.msra.mxu0 %v740
        %914 = vmatprep.subr.mxu0 0.0
        %915 = vmatpush1.xpose.msra.mxu0 %v743
        %916 = vmatprep.subr.mxu0 0.0
        %917 = vmatpush1.xpose.msra.mxu0 %v746
        %918 = vmatprep.subr.mxu0 0.0
        %919 = vmatpush1.xpose.msra.mxu0 %v749
        %920 = vmatprep.subr.mxu0 0.0
        %921 = vmatpush1.xpose.msra.mxu0 %v752
        %922 = vmatprep.subr.mxu0 0.0
        %923 = vmatpush1.xpose.msra.mxu0 %v755
        %924 = vmatprep.subr.mxu0 0.0
        %925 = vmatpush1.xpose.msra.mxu0 %v758
        %926 = vmatprep.subr.mxu0 0.0
        %927 = vmatpush1.xpose.msra.mxu0 %v761
        %928 = vmatprep.subr.mxu0 0.0
        %929 = vmatpush1.xpose.msra.mxu0 %v764
        %930 = vmatprep.subr.mxu0 0.0
        %931 = vmatpush1.xpose.msra.mxu0 %v767
        %932 = vmatprep.subr.mxu0 0.0
        %933 = vmatpush1.xpose.msra.mxu0 %v770
        %934 = vmatprep.subr.mxu0 0.0
        %935 = vmatpush1.xpose.msra.mxu0 %v773
        %936 = vmatprep.subr.mxu0 0.0
        %937 = vmatpush1.xpose.msra.mxu0 %v776
        %938 = vmatprep.subr.mxu0 0.0
        %939 = vmatpush1.xpose.msra.mxu0 %v779
        %940 = vmatprep.subr.mxu0 0.0
        %941 = vmatpush1.xpose.msra.mxu0 %v782
        %942 = vmatprep.subr.mxu0 0.0
        %943 = vmatpush1.xpose.msra.mxu0 %v785
        %944 = vmatprep.subr.mxu0 0.0
        %945 = vmatpush1.xpose.msra.mxu0 %v788
        %946 = vmatprep.subr.mxu0 0.0
        %947 = vmatpush1.xpose.msra.mxu0 %v791
        %948 = vmatprep.subr.mxu0 0.0
        %949 = vmatpush1.xpose.msra.mxu0 %v794
        %950 = vmatprep.subr.mxu0 0.0
        %951 = vmatpush1.xpose.msra.mxu0 %v797
        %952 = vmatprep.subr.mxu0 0.0
        %953 = vmatpush1.xpose.msra.mxu0 %v800
        %954 = vmatprep.subr.mxu0 0.0
        %955 = vmatpush1.xpose.msra.mxu0 %v803
        %956 = vmatprep.subr.mxu0 0.0
        %957 = vmatpush1.xpose.msra.mxu0 %v806
        %958 = vmatprep.mubr.f32.mxu0 0.0
        %959 = vmatmul.mubr.f32.gmra.mrb[0].mxu0 %v886
        %v960 = vpop.f32.mrb[0].mxu0
        %v961 = vadd.f32 %v881, %v960
        %v962 = vpop.f32.mrb[0].mxu0
        %v963 = vadd.f32 %v883, %v962
        %964 = vdwg.mxu0
        %966 = vset.pattern.permute.xlu0 0
        %967 = vperm.xlu0 %966, %v676
        %v968 = vpop.permute.xlu0 %967
        %v970 = vadd.f32 %v961, %v968
        %v971 = vadd.f32 %v963, %v968
        %972 = vst [vmem:[%s163] sm:$0xff] %v970
        %973 = vst [vmem:[%s163 + $0x8] sm:$0xff] %v971
        %v974 = vld [vmem:[#allocation2 + $0x10] sm:$0xff]
        %v975 = vld [vmem:[#allocation2 + $0x18] sm:$0xff]
        %v976 = vld [vmem:[#allocation2 + $0x20] sm:$0xff]
        %v977 = vld [vmem:[#allocation2 + $0x28] sm:$0xff]
        %v978 = vld [vmem:[#allocation2 + $0x30] sm:$0xff]
        %v979 = vld [vmem:[#allocation2 + $0x38] sm:$0xff]
        %v980 = vld [vmem:[#allocation2 + $0x40] sm:$0xff]
        %v981 = vld [vmem:[#allocation2 + $0x48] sm:$0xff]
        %v982 = vld [vmem:[#allocation2 + $0x50] sm:$0xff]
        %v983 = vld [vmem:[#allocation2 + $0x58] sm:$0xff]
        %v984 = vld [vmem:[#allocation2 + $0x60] sm:$0xff]
        %v985 = vld [vmem:[#allocation2 + $0x68] sm:$0xff]
        %v986 = vld [vmem:[#allocation2 + $0x70] sm:$0xff]
        %v987 = vld [vmem:[#allocation2 + $0x78] sm:$0xff]
        %v988 = vld [vmem:[#allocation2 + $0x80] sm:$0xff]
        %v989 = vld [vmem:[#allocation2 + $0x88] sm:$0xff]
        %v990 = vld [vmem:[#allocation2 + $0x90] sm:$0xff]
        %v991 = vld [vmem:[#allocation2 + $0x98] sm:$0xff]
        %v992 = vld [vmem:[#allocation2 + $0xa0] sm:$0xff]
        %v993 = vld [vmem:[#allocation2 + $0xa8] sm:$0xff]
        %v994 = vld [vmem:[#allocation2 + $0xb0] sm:$0xff]
        %v995 = vld [vmem:[#allocation2 + $0xb8] sm:$0xff]
        %v996 = vld [vmem:[#allocation2 + $0xc0] sm:$0xff]
        %v997 = vld [vmem:[#allocation2 + $0xc8] sm:$0xff]
        %v998 = vld [vmem:[#allocation2 + $0xd0] sm:$0xff]
        %v999 = vld [vmem:[#allocation2 + $0xd8] sm:$0xff]
        %v1000 = vld [vmem:[#allocation2 + $0xe0] sm:$0xff]
        %v1001 = vld [vmem:[#allocation2 + $0xe8] sm:$0xff]
        %v1002 = vld [vmem:[#allocation2 + $0xf0] sm:$0xff]
        %v1003 = vld [vmem:[#allocation2 + $0xf8] sm:$0xff]
        %v1004 = vld [vmem:[#allocation2 + $0x100] sm:$0xff]
        %v1005 = vld [vmem:[#allocation2 + $0x108] sm:$0xff]
        %v1006 = vld [vmem:[#allocation2 + $0x110] sm:$0xff]
        %v1007 = vld [vmem:[#allocation2 + $0x118] sm:$0xff]
        %s1008 = scalar_lea.vmem %s1, 16
        %v1009 = vld [vmem:[%s1008] sm:$0xff]
        %s1010 = scalar_lea.vmem %s1, 24
        %v1011 = vld [vmem:[%s1010] sm:$0xff]
        %v1013 = vsel %vm714, %v1011, 0
        %v1016 = vsel %vm714, %v976, 0
        %v1019 = vsel %vm714, %v977, 0
        %v1022 = vsel %vm714, %v978, 0
        %v1025 = vsel %vm714, %v979, 0
        %v1028 = vsel %vm714, %v980, 0
        %v1031 = vsel %vm714, %v981, 0
        %v1034 = vsel %vm714, %v982, 0
        %v1037 = vsel %vm714, %v983, 0
        %v1040 = vsel %vm714, %v984, 0
        %v1043 = vsel %vm714, %v985, 0
        %v1046 = vsel %vm714, %v986, 0
        %v1049 = vsel %vm714, %v987, 0
        %v1052 = vsel %vm714, %v988, 0
        %v1055 = vsel %vm714, %v989, 0
        %v1058 = vsel %vm714, %v990, 0
        %v1061 = vsel %vm714, %v991, 0
        %v1064 = vsel %vm714, %v992, 0
        %v1067 = vsel %vm714, %v993, 0
        %v1070 = vsel %vm714, %v994, 0
        %v1073 = vsel %vm714, %v995, 0
        %v1076 = vsel %vm714, %v996, 0
        %v1079 = vsel %vm714, %v997, 0
        %v1082 = vsel %vm714, %v998, 0
        %v1085 = vsel %vm714, %v999, 0
        %v1088 = vsel %vm714, %v1000, 0
        %v1091 = vsel %vm714, %v1001, 0
        %v1094 = vsel %vm714, %v1002, 0
        %v1097 = vsel %vm714, %v1003, 0
        %v1100 = vsel %vm714, %v1004, 0
        %v1103 = vsel %vm714, %v1005, 0
        %v1106 = vsel %vm714, %v1006, 0
        %v1109 = vsel %vm714, %v1007, 0
        %1111 = vmatprep.subr.mxu0 0.0
        %1112 = vmatpush1.xpose.msra.mxu0 %v1016
        %1113 = vmatprep.subr.mxu0 0.0
        %1114 = vmatpush1.xpose.msra.mxu0 %v1019
        %1115 = vmatprep.subr.mxu0 0.0
        %1116 = vmatpush1.xpose.msra.mxu0 %v1022
        %1117 = vmatprep.subr.mxu0 0.0
        %1118 = vmatpush1.xpose.msra.mxu0 %v1025
        %1119 = vmatprep.subr.mxu0 0.0
        %1120 = vmatpush1.xpose.msra.mxu0 %v1028
        %1121 = vmatprep.subr.mxu0 0.0
        %1122 = vmatpush1.xpose.msra.mxu0 %v1031
        %1123 = vmatprep.subr.mxu0 0.0
        %1124 = vmatpush1.xpose.msra.mxu0 %v1034
        %1125 = vmatprep.subr.mxu0 0.0
        %1126 = vmatpush1.xpose.msra.mxu0 %v1037
        %1127 = vmatprep.subr.mxu0 0.0
        %1128 = vmatpush1.xpose.msra.mxu0 %v1040
        %1129 = vmatprep.subr.mxu0 0.0
        %1130 = vmatpush1.xpose.msra.mxu0 %v1043
        %1131 = vmatprep.subr.mxu0 0.0
        %1132 = vmatpush1.xpose.msra.mxu0 %v1046
        %1133 = vmatprep.subr.mxu0 0.0
        %1134 = vmatpush1.xpose.msra.mxu0 %v1049
        %1135 = vmatprep.subr.mxu0 0.0
        %1136 = vmatpush1.xpose.msra.mxu0 %v1052
        %1137 = vmatprep.subr.mxu0 0.0
        %1138 = vmatpush1.xpose.msra.mxu0 %v1055
        %1139 = vmatprep.subr.mxu0 0.0
        %1140 = vmatpush1.xpose.msra.mxu0 %v1058
        %1141 = vmatprep.subr.mxu0 0.0
        %1142 = vmatpush1.xpose.msra.mxu0 %v1061
        %1143 = vmatprep.subr.mxu0 0.0
        %1144 = vmatpush1.xpose.msra.mxu0 %v1064
        %1145 = vmatprep.subr.mxu0 0.0
        %1146 = vmatpush1.xpose.msra.mxu0 %v1067
        %1147 = vmatprep.subr.mxu0 0.0
        %1148 = vmatpush1.xpose.msra.mxu0 %v1070
        %1149 = vmatprep.subr.mxu0 0.0
        %1150 = vmatpush1.xpose.msra.mxu0 %v1073
        %1151 = vmatprep.subr.mxu0 0.0
        %1152 = vmatpush1.xpose.msra.mxu0 %v1076
        %1153 = vmatprep.subr.mxu0 0.0
        %1154 = vmatpush1.xpose.msra.mxu0 %v1079
        %1155 = vmatprep.subr.mxu0 0.0
        %1156 = vmatpush1.xpose.msra.mxu0 %v1082
        %1157 = vmatprep.subr.mxu0 0.0
        %1158 = vmatpush1.xpose.msra.mxu0 %v1085
        %1159 = vmatprep.subr.mxu0 0.0
        %1160 = vmatpush1.xpose.msra.mxu0 %v1088
        %1161 = vmatprep.subr.mxu0 0.0
        %1162 = vmatpush1.xpose.msra.mxu0 %v1091
        %1163 = vmatprep.subr.mxu0 0.0
        %1164 = vmatpush1.xpose.msra.mxu0 %v1094
        %1165 = vmatprep.subr.mxu0 0.0
        %1166 = vmatpush1.xpose.msra.mxu0 %v1097
        %1167 = vmatprep.subr.mxu0 0.0
        %1168 = vmatpush1.xpose.msra.mxu0 %v1100
        %1169 = vmatprep.subr.mxu0 0.0
        %1170 = vmatpush1.xpose.msra.mxu0 %v1103
        %1171 = vmatprep.subr.mxu0 0.0
        %1172 = vmatpush1.xpose.msra.mxu0 %v1106
        %1173 = vmatprep.subr.mxu0 0.0
        %1174 = vmatpush1.xpose.msra.mxu0 %v1109
        %1175 = vmatprep.mubr.f32.mxu0 0.0
        %1176 = vmatmul.mubr.f32.gmra.mrb[0].mxu0 %v1013
        %v1177 = vpop.f32.mrb[0].mxu0
        %v1178 = vadd.f32 0.0, %v1177
        %v1179 = vpop.f32.mrb[0].mxu0
        %v1180 = vadd.f32 0.0, %v1179
        %1181 = vdwg.mxu0
        %v1183 = vsel %vm714, %v1009, 0
        %v1186 = vsel %vm714, %v974, 0
        %v1189 = vsel %vm714, %v975, 0
        %1191 = vmatprep.subr.mxu0 0.0
        %1192 = vmatpush1.xpose.msra.mxu0 %v1186
        %1193 = vmatprep.subr.mxu0 0.0
        %1194 = vmatpush1.xpose.msra.mxu0 %v1189
        %1195 = vmatprep.subr.mxu0 0.0
        %1196 = vmatpush1.xpose.msra.mxu0 %v1016
        %1197 = vmatprep.subr.mxu0 0.0
        %1198 = vmatpush1.xpose.msra.mxu0 %v1019
        %1199 = vmatprep.subr.mxu0 0.0
        %1200 = vmatpush1.xpose.msra.mxu0 %v1022
        %1201 = vmatprep.subr.mxu0 0.0
        %1202 = vmatpush1.xpose.msra.mxu0 %v1025
        %1203 = vmatprep.subr.mxu0 0.0
        %1204 = vmatpush1.xpose.msra.mxu0 %v1028
        %1205 = vmatprep.subr.mxu0 0.0
        %1206 = vmatpush1.xpose.msra.mxu0 %v1031
        %1207 = vmatprep.subr.mxu0 0.0
        %1208 = vmatpush1.xpose.msra.mxu0 %v1034
        %1209 = vmatprep.subr.mxu0 0.0
        %1210 = vmatpush1.xpose.msra.mxu0 %v1037
        %1211 = vmatprep.subr.mxu0 0.0
        %1212 = vmatpush1.xpose.msra.mxu0 %v1040
        %1213 = vmatprep.subr.mxu0 0.0
        %1214 = vmatpush1.xpose.msra.mxu0 %v1043
        %1215 = vmatprep.subr.mxu0 0.0
        %1216 = vmatpush1.xpose.msra.mxu0 %v1046
        %1217 = vmatprep.subr.mxu0 0.0
        %1218 = vmatpush1.xpose.msra.mxu0 %v1049
        %1219 = vmatprep.subr.mxu0 0.0
        %1220 = vmatpush1.xpose.msra.mxu0 %v1052
        %1221 = vmatprep.subr.mxu0 0.0
        %1222 = vmatpush1.xpose.msra.mxu0 %v1055
        %1223 = vmatprep.subr.mxu0 0.0
        %1224 = vmatpush1.xpose.msra.mxu0 %v1058
        %1225 = vmatprep.subr.mxu0 0.0
        %1226 = vmatpush1.xpose.msra.mxu0 %v1061
        %1227 = vmatprep.subr.mxu0 0.0
        %1228 = vmatpush1.xpose.msra.mxu0 %v1064
        %1229 = vmatprep.subr.mxu0 0.0
        %1230 = vmatpush1.xpose.msra.mxu0 %v1067
        %1231 = vmatprep.subr.mxu0 0.0
        %1232 = vmatpush1.xpose.msra.mxu0 %v1070
        %1233 = vmatprep.subr.mxu0 0.0
        %1234 = vmatpush1.xpose.msra.mxu0 %v1073
        %1235 = vmatprep.subr.mxu0 0.0
        %1236 = vmatpush1.xpose.msra.mxu0 %v1076
        %1237 = vmatprep.subr.mxu0 0.0
        %1238 = vmatpush1.xpose.msra.mxu0 %v1079
        %1239 = vmatprep.subr.mxu0 0.0
        %1240 = vmatpush1.xpose.msra.mxu0 %v1082
        %1241 = vmatprep.subr.mxu0 0.0
        %1242 = vmatpush1.xpose.msra.mxu0 %v1085
        %1243 = vmatprep.subr.mxu0 0.0
        %1244 = vmatpush1.xpose.msra.mxu0 %v1088
        %1245 = vmatprep.subr.mxu0 0.0
        %1246 = vmatpush1.xpose.msra.mxu0 %v1091
        %1247 = vmatprep.subr.mxu0 0.0
        %1248 = vmatpush1.xpose.msra.mxu0 %v1094
        %1249 = vmatprep.subr.mxu0 0.0
        %1250 = vmatpush1.xpose.msra.mxu0 %v1097
        %1251 = vmatprep.subr.mxu0 0.0
        %1252 = vmatpush1.xpose.msra.mxu0 %v1100
        %1253 = vmatprep.subr.mxu0 0.0
        %1254 = vmatpush1.xpose.msra.mxu0 %v1103
        %1255 = vmatprep.mubr.f32.mxu0 0.0
        %1256 = vmatmul.mubr.f32.gmra.mrb[0].mxu0 %v1183
        %v1257 = vpop.f32.mrb[0].mxu0
        %v1258 = vadd.f32 %v1178, %v1257
        %v1259 = vpop.f32.mrb[0].mxu0
        %v1260 = vadd.f32 %v1180, %v1259
        %1261 = vdwg.mxu0
        %v1262 = vadd.f32 %v1258, %v968
        %v1263 = vadd.f32 %v1260, %v968
        %s1264 = scalar_lea.vmem %s163, 16 [#allocation3]
        %1265 = vst [vmem:[%s1264] sm:$0xff] %v1262
        %1266 = vst [vmem:[%s1264 + $0x8] sm:$0xff] %v1263
        %s1267 = sand.u32 %s93, 1
        %s1268 = scalar_lea.sflag [#allocation4], %s1267
        %s1269 = sand.u32 %s93, 1
        %s1270 = smul.addr %s1269, 32
        %s1271 = scalar_lea.vmem [#allocation3], %s1270
        // Predicated region
        $region33: #{tpu_custom_call.1} parent=31 // pred_check
          %p1272 = pneg %p103
        $region34: #{tpu_custom_call.1} parent=31 // pred_check_branch
          %1274 = sbr.rel (%p1272) target = $region36
        $region35: #{tpu_custom_call.1} parent=31 // pred_region
          %s1276 = ssub.s32 512, 512
          %1277 = vsyncadd %s1268, %s1276
          %s1278 = smul.addr %s17, 4
          %s1279 = smul.addr %s1278, 128
          %s1280 = scalar_lea.hbm %s3, %s1279
          %s1281 = sshll.u32 %s1271, 4
          %s1282 = int_to_ptr.vmem [resolvable:$true] %s1281
          %1287 = dma.vmem_to_hbm [thread:$0]  %s1282, 512, %s1280, %s1268, 256, 256, 16
        $region36: #{tpu_custom_call.1} parent=31 // pred_fallthru
          _
      $region32: #{tpu_custom_call.1} parent=5 // pred_fallthru
        _
      %p1288 = scmp.le.s32.totalorder 2, %s12
      // Predicated region
      $region37: #{tpu_custom_call.1} parent=5 // pred_check
        %p1289 = pneg %p1288
      $region38: #{tpu_custom_call.1} parent=5 // pred_check_branch
        %1291 = sbr.rel (%p1289) target = $region40
      $region39: #{tpu_custom_call.1} parent=5 // pred_region
        %s1292 = ssub.s32 %s12, 2
        // Predicated region
        $region41: #{tpu_custom_call.1} parent=39 // pred_check
          %p1293 = pneg %p109
        $region42: #{tpu_custom_call.1} parent=39 // pred_check_branch
          %1295 = sbr.rel (%p1293) target = $region44
        $region43: #{tpu_custom_call.1} parent=39 // pred_region
          %s1296 = sand.u32 %s94, 1
          %s1297 = scalar_lea.sflag [#allocation4], %s1296
          %s1298 = sand.u32 %s94, 1
          %s1299 = smul.addr %s1298, 32
          %s1300 = scalar_lea.vmem [#allocation3], %s1299
          %1301 = dma.done %s1297, 512
        $region44: #{tpu_custom_call.1} parent=39 // pred_fallthru
          _
      $region40: #{tpu_custom_call.1} parent=5 // pred_fallthru
        _
    $region6: #{tpu_custom_call.1} parent=1 // loop_footer
      %s16 = sadd.s32 1, %s12
    $region7: #{tpu_custom_call.1} parent=1 // loop_footer_branch
      %11 = sbr.rel target = $region3
    $region8: #{tpu_custom_call.1} parent=1 // loop_exit
      _
    %1302 = vsyncpa [#allocation4], 1
    %s1303 = scalar_lea.sflag [#allocation4], 1
    %1304 = vsyncpa %s1303, 1

</llo_original>
